<compile_context>
chip_gen: v5e
topology: v5e:2x2
jax: 0.10.0
libtpu: 0.0.40
codegen_flags: <defaults>
</compile_context>

<pallas_src>
import functools

import jax
import jax.numpy as jnp
from jax import lax
from jax.experimental import pallas as pl
from jax.experimental.pallas import tpu as pltpu


# ----------------------------------------------------------------------------
# Fused kernel: global average pool (over H*W) + 1x1 conv (c1 -> c2) + bias
# ----------------------------------------------------------------------------
def classify_kernel(x_ref, wt_ref, b_ref, o_ref, acc_ref, *, hw, ts, inv_hw):
    # x_ref:  (Nb, c1, ts)  one spatial tile of Nb images (H*W on the lane axis)
    # wt_ref: (1, c1, c2)   conv weight, transposed so the contraction dim is first
    # b_ref:  (1, 1, c2)    conv bias
    # o_ref:  (Nb, 1, c2)   output rows for this batch block
    # acc_ref:(Nb, c1, 1)   running spatial sums (f32), persist across spatial tiles
    t = pl.program_id(1)
    nt = pl.num_programs(1)

    @pl.when(t == 0)
    def _init():
        acc_ref[...] = jnp.zeros_like(acc_ref)

    def _accumulate(mask_tail):
        x = x_ref[...].astype(jnp.float32)                     # (Nb, c1, ts)
        if mask_tail:                                          # static flag
            col = t * ts + lax.broadcasted_iota(jnp.int32, x.shape, 2)
            x = jnp.where(col < hw, x, 0.0)
        # XLU lane reduction over the spatial tile (hidden under the DMA)
        acc_ref[...] += jnp.sum(x, axis=-1, keepdims=True)     # (Nb, c1, 1)

    if hw % ts != 0:
        # A masked tail tile exists: only the LAST tile pays for the mask.
        @pl.when(t != nt - 1)
        def _bulk():
            _accumulate(False)

        @pl.when(t == nt - 1)
        def _tail():
            _accumulate(True)
    else:
        _accumulate(False)

    @pl.when(t == nt - 1)
    def _finish():
        # pooled means, relayout (Nb, c1, 1) -> lane-dense (Nb, c1) once per block
        z = jnp.squeeze(acc_ref[...], axis=-1) * inv_hw        # (Nb, c1)
        # tiny (Nb, c1) @ (c1, c2) projection on the MXU (no giant VPU temporary)
        y = jnp.dot(z, wt_ref[0], preferred_element_type=jnp.float32) + b_ref[0]
        o_ref[...] = y[:, None, :].astype(o_ref.dtype)         # (Nb, 1, c2)


def _round_up(x, m):
    return ((x + m - 1) // m) * m


def _pooled_projection(x_nchw, wt_2d, bias_1d, *, block_bytes=4 << 20):
    """mean over (H,W) of x, then @ wt_2d (c1,c2) + bias  ->  (N, c2)."""
    N, c1, H, W = x_nchw.shape
    hw = H * W
    c2 = wt_2d.shape[1]
    itemsize = jnp.dtype(x_nchw.dtype).itemsize
    per_image = c1 * hw * itemsize

    if per_image <= block_bytes:
        # Small spatial extent: stream whole images, Nb images per grid step.
        ts, num_t = hw, 1
        nb_cap = max(1, min(block_bytes // per_image, N))
        if N >= 2:                      # keep >= 2 parallel steps for v7x megacore
            nb_cap = min(nb_cap, (N + 1) // 2)
        nb = max(d for d in range(1, nb_cap + 1) if N % d == 0)
    else:
        # Large spatial extent: balanced, 128-aligned spatial tiles, one image each.
        nb = 1
        lanes = max(128, ((block_bytes // (c1 * itemsize)) // 128) * 128)
        num_t = pl.cdiv(hw, lanes)
        ts = _round_up(pl.cdiv(hw, num_t), 128)
        num_t = pl.cdiv(hw, ts)
    num_nb = N // nb

    x_flat = x_nchw.reshape(N, c1, hw)            # free reshape of contiguous NCHW
    wt3 = wt_2d.reshape(1, c1, c2).astype(jnp.float32)
    b3 = bias_1d.reshape(1, 1, c2).astype(jnp.float32)

    kern = functools.partial(classify_kernel, hw=hw, ts=ts, inv_hw=1.0 / hw)
    out = pl.pallas_call(
        kern,
        out_shape=jax.ShapeDtypeStruct((N, 1, c2), jnp.float32),
        grid_spec=pltpu.PrefetchScalarGridSpec(
            num_scalar_prefetch=0,
            grid=(num_nb, num_t),
            in_specs=[
                pl.BlockSpec((nb, c1, ts), lambda n, t: (n, 0, t)),
                # constant index maps: fetched once, resident thereafter
                pl.BlockSpec((1, c1, c2), lambda n, t: (0, 0, 0)),
                pl.BlockSpec((1, 1, c2), lambda n, t: (0, 0, 0)),
            ],
            out_specs=pl.BlockSpec((nb, 1, c2), lambda n, t: (n, 0, 0)),
            scratch_shapes=[pltpu.VMEM((nb, c1, 1), jnp.float32)],
        ),
        compiler_params=pltpu.CompilerParams(
            dimension_semantics=("parallel", "arbitrary"),
            vmem_limit_bytes=48 * 1024 * 1024),
    )(x_flat, wt3, b3)
    return out.reshape(N, c2)


# ----------------------------------------------------------------------------
# Classify wrapper (handles the torch `list` input path: pool each, concat on C)
# ----------------------------------------------------------------------------
def classify_forward(x, weight, bias):
    """x: (N, c1, H, W) or list of such; weight: (c2, c1_total, 1, 1); bias: (c2,)."""
    xs = list(x) if isinstance(x, (list, tuple)) else [x]
    c2 = weight.shape[0]
    w2d = weight.reshape(c2, -1)                  # (c2, c1_total)

    out = None
    col = 0
    for i, xi in enumerate(xs):
        ci = xi.shape[1]
        wt_i = jnp.transpose(w2d[:, col:col + ci])            # (ci, c2)
        b_i = bias if i == 0 else jnp.zeros_like(bias)        # add bias exactly once
        part = _pooled_projection(xi, wt_i, b_i)              # (N, c2)
        out = part if out is None else out + part
        col += ci
    return out


# ----------------------------------------------------------------------------
# Pure-JAX reference
# ----------------------------------------------------------------------------
def classify_reference(x, weight, bias):
    xs = list(x) if isinstance(x, (list, tuple)) else [x]
    z = jnp.concatenate([xi.mean(axis=(2, 3)) for xi in xs], axis=1)   # (N, c1_total)
    c2 = weight.shape[0]
    return z @ weight.reshape(c2, -1).T + bias[None, :]


# ----------------------------------------------------------------------------
# Main
# ----------------------------------------------------------------------------
if __name__ == "__main__":
    N, c1, H, W = 2, 4, 16, 16
    c2 = 8

    key = jax.random.PRNGKey(0)
    k1, k2, k3, k4 = jax.random.split(key, 4)

    # single-tensor input (PyTorch NCHW layout)
    x = jax.random.normal(k1, (N, c1, H, W), jnp.float32)
    # nn.Conv2d(c1, c2, 1) parameters: weight (c2, c1, 1, 1), bias (c2,)
    weight = jax.random.normal(k2, (c2, c1, 1, 1), jnp.float32) * 0.1
    bias = jax.random.normal(k3, (c2,), jnp.float32) * 0.1

    out = jax.block_until_ready(classify_forward(x, weight, bias))
    ref = jax.block_until_ready(classify_reference(x, weight, bias))
    assert out.shape == (N, c2), out.shape
    assert jnp.allclose(out, ref, atol=1e-4, rtol=1e-4), float(jnp.max(jnp.abs(out - ref)))

    # list-input path (torch: pooled features concatenated along channels)
    x2 = jax.random.normal(k4, (N, c1, 8, 8), jnp.float32)
    weight_l = jax.random.normal(k2, (c2, 2 * c1, 1, 1), jnp.float32) * 0.1
    out_l = jax.block_until_ready(classify_forward([x, x2], weight_l, bias))
    ref_l = jax.block_until_ready(classify_reference([x, x2], weight_l, bias))
    assert out_l.shape == (N, c2), out_l.shape
    assert jnp.allclose(out_l, ref_l, atol=1e-4, rtol=1e-4), float(jnp.max(jnp.abs(out_l - ref_l)))

    print("KERNEL_OK")
</pallas_src>

<mosaic_0001>
module attributes {stable_mosaic.version = 11 : i64} {
  func.func @classify_kernel(%arg0: i32, %arg1: i32, %arg2: memref<1x4x256xf32, #tpu.memory_space<vmem>>, %arg3: memref<1x4x8xf32, #tpu.memory_space<vmem>>, %arg4: memref<1x1x8xf32, #tpu.memory_space<vmem>>, %arg5: memref<1x1x8xf32, #tpu.memory_space<vmem>>, %arg6: memref<1x4x1xf32, #tpu.memory_space<vmem>>) attributes {dimension_semantics = [#tpu.dimension_semantics<parallel>, #tpu.dimension_semantics<arbitrary>], iteration_bounds = array<i64: 2, 1>, scalar_prefetch = 0 : i64, scratch_operands = 1 : i64, tpu.core_type = #tpu.core_type<tc>, window_params = [{transform_indices = @transform_0, window_bounds = array<i64: 1, 4, 256>}, {pipeline_mode = #tpu.pipeline_mode<synchronous>, transform_indices = @transform_1, window_bounds = array<i64: 1, 4, 8>}, {pipeline_mode = #tpu.pipeline_mode<synchronous>, transform_indices = @transform_2, window_bounds = array<i64: 1, 1, 8>}, {transform_indices = @transform_3, window_bounds = array<i64: 1, 1, 8>}]} {
    %c0_i32 = arith.constant 0 : i32
    %0 = arith.cmpi eq, %arg1, %c0_i32 : i32
    %1 = arith.extui %0 : i1 to i32
    %c0_i32_0 = arith.constant 0 : i32
    %2 = arith.cmpi ne, %1, %c0_i32_0 : i32
    scf.if %2 {
      %cst_11 = arith.constant 0.000000e+00 : f32
      %12 = vector.broadcast %cst_11 : f32 to vector<1x4x1xf32>
      %c0_12 = arith.constant 0 : index
      %c0_13 = arith.constant 0 : index
      %c0_14 = arith.constant 0 : index
      %13 = vector.load %arg6[%c0_12, %c0_13, %c0_14] : memref<1x4x1xf32, #tpu.memory_space<vmem>>, vector<1x4x1xf32>
      tpu.vector_store %arg6[%c0_12, %c0_13, %c0_14], %12 {strides = array<i32>} : memref<1x4x1xf32, #tpu.memory_space<vmem>>, vector<1x4x1xf32>,
    } else {
    }
    %c0 = arith.constant 0 : index
    %c0_1 = arith.constant 0 : index
    %c0_2 = arith.constant 0 : index
    %3 = vector.load %arg2[%c0, %c0_1, %c0_2] : memref<1x4x256xf32, #tpu.memory_space<vmem>>, vector<1x4x256xf32>
    %c0_3 = arith.constant 0 : index
    %c0_4 = arith.constant 0 : index
    %c0_5 = arith.constant 0 : index
    %4 = vector.load %arg6[%c0_3, %c0_4, %c0_5] : memref<1x4x1xf32, #tpu.memory_space<vmem>>, vector<1x4x1xf32>
    %cst = arith.constant dense<0.000000e+00> : vector<1x4xf32>
    %5 = vector.multi_reduction <add>, %3, %cst [2] : vector<1x4x256xf32> to vector<1x4xf32>
    %6 = vector.shape_cast %5 : vector<1x4xf32> to vector<1x4x1xf32>
    %7 = arith.addf %4, %6 : vector<1x4x1xf32>
    %c0_6 = arith.constant 0 : index
    %c0_7 = arith.constant 0 : index
    %c0_8 = arith.constant 0 : index
    %8 = vector.load %arg6[%c0_6, %c0_7, %c0_8] : memref<1x4x1xf32, #tpu.memory_space<vmem>>, vector<1x4x1xf32>
    tpu.vector_store %arg6[%c0_6, %c0_7, %c0_8], %7 {strides = array<i32>} : memref<1x4x1xf32, #tpu.memory_space<vmem>>, vector<1x4x1xf32>,
    %c0_i32_9 = arith.constant 0 : i32
    %9 = arith.cmpi eq, %arg1, %c0_i32_9 : i32
    %10 = arith.extui %9 : i1 to i32
    %c0_i32_10 = arith.constant 0 : i32
    %11 = arith.cmpi ne, %10, %c0_i32_10 : i32
    scf.if %11 {
      %c0_11 = arith.constant 0 : index
      %c0_12 = arith.constant 0 : index
      %c0_13 = arith.constant 0 : index
      %12 = vector.load %arg6[%c0_11, %c0_12, %c0_13] : memref<1x4x1xf32, #tpu.memory_space<vmem>>, vector<1x4x1xf32>
      %13 = vector.shape_cast %12 : vector<1x4x1xf32> to vector<1x4xf32>
      %cst_14 = arith.constant 3.906250e-03 : f32
      %14 = vector.broadcast %cst_14 : f32 to vector<1x4xf32>
      %15 = arith.mulf %13, %14 : vector<1x4xf32>
      %c0_15 = arith.constant 0 : index
      %c0_16 = arith.constant 0 : index
      %c0_17 = arith.constant 0 : index
      %16 = vector.load %arg3[%c0_15, %c0_16, %c0_17] : memref<1x4x8xf32, #tpu.memory_space<vmem>>, vector<1x4x8xf32>
      %17 = vector.shape_cast %16 : vector<1x4x8xf32> to vector<4x8xf32>
      %cst_18 = arith.constant dense<0.000000e+00> : vector<1x8xf32>
      %18 = tpu.matmul %15, %17, %cst_18 {dimension_numbers = #tpu.dot_dimension_numbers<[1], [0], [0], [1], [0, 0, 1, 1], [], []>} : vector<1x4xf32>, vector<4x8xf32>, vector<1x8xf32> -> vector<1x8xf32>
      %c0_19 = arith.constant 0 : index
      %c0_20 = arith.constant 0 : index
      %c0_21 = arith.constant 0 : index
      %19 = vector.load %arg4[%c0_19, %c0_20, %c0_21] : memref<1x1x8xf32, #tpu.memory_space<vmem>>, vector<1x1x8xf32>
      %20 = vector.shape_cast %19 : vector<1x1x8xf32> to vector<1x8xf32>
      %21 = arith.addf %18, %20 : vector<1x8xf32>
      %22 = vector.shape_cast %21 : vector<1x8xf32> to vector<1x1x8xf32>
      %c0_22 = arith.constant 0 : index
      %c0_23 = arith.constant 0 : index
      %c0_24 = arith.constant 0 : index
      %23 = vector.load %arg5[%c0_22, %c0_23, %c0_24] : memref<1x1x8xf32, #tpu.memory_space<vmem>>, vector<1x1x8xf32>
      tpu.vector_store %arg5[%c0_22, %c0_23, %c0_24], %22 {strides = array<i32>} : memref<1x1x8xf32, #tpu.memory_space<vmem>>, vector<1x1x8xf32>,
    } else {
    }
    return
  }
  func.func @transform_0(%arg0: i32, %arg1: i32) -> (i32, i32, i32) {
    %c0_i32 = arith.constant 0 : i32
    %c0_i32_0 = arith.constant 0 : i32
    return %arg0, %c0_i32, %arg1 : i32, i32, i32
  }
  func.func @transform_1(%arg0: i32, %arg1: i32) -> (i32, i32, i32) {
    %c0_i32 = arith.constant 0 : i32
    %c0_i32_0 = arith.constant 0 : i32
    %c0_i32_1 = arith.constant 0 : i32
    %c0_i32_2 = arith.constant 0 : i32
    return %c0_i32, %c0_i32_0, %c0_i32_1 : i32, i32, i32
  }
  func.func @transform_2(%arg0: i32, %arg1: i32) -> (i32, i32, i32) {
    %c0_i32 = arith.constant 0 : i32
    %c0_i32_0 = arith.constant 0 : i32
    %c0_i32_1 = arith.constant 0 : i32
    %c0_i32_2 = arith.constant 0 : i32
    return %c0_i32, %c0_i32_0, %c0_i32_1 : i32, i32, i32
  }
  func.func @transform_3(%arg0: i32, %arg1: i32) -> (i32, i32, i32) {
    %c0_i32 = arith.constant 0 : i32
    %c0_i32_0 = arith.constant 0 : i32
    %c0_i32_1 = arith.constant 0 : i32
    return %arg0, %c0_i32, %c0_i32_0 : i32, i32, i32
  }
}

</mosaic_0001>

<llo_original>
// kernel: tpu_custom_call.1
$region0: #{tpu_custom_call.1}
  #allocation0 [shape = 'u32[]', space=smem, size = 0x4, offset = 0x4, fixed_abs, tag = 'smem constant byte address 0x4 - core index']
  #allocation1 [shape = 'u32[72,128]{1,0:T(1,128)}', space=vmem, size = 0x9000, scoped, tag = 'internal scratch']
  #allocation2 [shape = 'f32[1,4,1]{2,1,0:T(4,128)}', space=vmem, size = 0x800, scoped, tag = 'scratch operand']
  %s0 = inlined_call_operand.hbm [shape: f32[2,4,256], index: 0, kind: input, shape index: {}]
  %s1 = inlined_call_operand.hbm [shape: f32[1,4,8], index: 1, kind: input, shape index: {}]
  %s2 = inlined_call_operand.vmem [shape: f32[1,1,8], index: 2, kind: input, shape index: {}]
  %s3 = inlined_call_operand.hbm [shape: f32[2,1,8], index: 3, kind: output, shape index: {}]
  %s4 = sld [smem:[#allocation0]]
  $region61: #{tpu_custom_call.1} parent=0
    _
  %s6 = ssub.s32 1, %s4
  %s7 = scalar_select 0, %s6, %s4
  $region1: #{tpu_custom_call.1} parent=0
    #allocation3 [shape = 'u8[8192]{0}', space=vmem, size = 0x2000, scoped, tag = 'input window, operand 0']
    #allocation4 [shape = 's32[2]{0}', space=sflag, size = 0x8, scoped, tag = 'scoped memory for tpu_custom_call.1']
    #allocation5 [shape = 's32[2]{0}', space=sflag, size = 0x8, scoped, tag = 'scoped memory for tpu_custom_call.1']
    #allocation6 [shape = 'u8[2048]{0}', space=vmem, size = 0x800, scoped, tag = 'input window, operand 1, single buffered']
    #allocation7 [shape = 's32[1]{0}', space=sflag, size = 0x4, scoped, tag = 'scoped memory for tpu_custom_call.1']
    #allocation8 [shape = 'u8[1024]{0}', space=vmem, size = 0x400, scoped, tag = 'output window, operand 0']
    %8 = vsyncpa [#allocation4], 0
    %s9 = scalar_lea.sflag [#allocation4], 1
    %10 = vsyncpa %s9, 0
    %11 = vsyncpa [#allocation7], 0
    %12 = vsyncpa [#allocation5], 0
    %s13 = scalar_lea.sflag [#allocation5], 1
    %14 = vsyncpa %s13, 0
    loop: start=0, step=1, limit=4
    $region2: #{tpu_custom_call.1} parent=1 // loop_pre_header
      _
    $region3: #{tpu_custom_call.1} parent=1 // loop_header
      %s16 = sphi 0, %s20
      %p17 = scmp.ge.s32.totalorder %s16, 4
      %s23 = sphi 0, %s35
      %s24 = sphi 0, %s31
      %s25 = sphi 0, %s23
      %s26 = sphi 0, %s24
      %s27 = sphi 0, %s25
      %s28 = sphi 0, %s26
      %s40 = sphi 0, %s42
      %s43 = sphi 0, %s40
      %s44 = sphi 0, %s43
      %s60 = sphi 0, %s44
      %s64 = sphi 0, %s64
      %s66 = sphi 0, %s64
      %s67 = sphi 0, %s66
      %s81 = sphi 0, %s67
      %s85 = sphi 0, %s85
      %s87 = sphi 0, %s85
      %s88 = sphi 0, %s87
      %s102 = sphi 0, %s88
      %s108 = sphi 0, %s110
      %s111 = sphi 0, %s108
      %s112 = sphi 0, %s111
      %s128 = sphi 0, %s112
    $region4: #{tpu_custom_call.1} parent=1 // loop_header_branch
      %19 = sbr.rel (%p17) target = $region8
    $region5: #{tpu_custom_call.1} parent=1 // loop_body
      %s21 = ssub.s32 %s16, 1
      %s22 = ssub.s32 %s16, 2
      %s29 = sadd.s32 1, %s24
      %p30 = scmp.ge.s32.totalorder %s29, 1
      %s31 = scalar_select %p30, 0, %s29
      %s32 = sadd.s32 1, %s23
      %s33 = scalar_select %p30, %s32, %s23
      %p34 = scmp.ge.s32.totalorder %s33, 2
      %s35 = scalar_select %p34, 0, %s33
      %s36 = ssub.s32 %s23, %s35
      %s37 = ssub.s32 %s24, %s31
      %s38 = sor.u32 %s36, %s37
      %p39 = scmp.eq.s32.totalorder %s38, 0
      %s41 = sadd.s32 %s40, 1
      %s42 = scalar_select %p39, %s40, %s41
      %p45 = pneg %p39
      %p46 = scmp.eq.s32.totalorder %s16, 1
      %p47 = por %p45, %p46
      %p48 = scmp.ne.s32.totalorder %s40, %s43
      %p49 = scmp.eq.s32.totalorder %s16, 0
      %p50 = por %p48, %p49
      %p51 = scmp.ne.s32.totalorder %s40, %s43
      %p52 = scmp.eq.s32.totalorder %s21, 1
      %p53 = por %p51, %p52
      %p54 = scmp.ne.s32.totalorder %s43, %s44
      %p55 = scmp.eq.s32.totalorder %s21, 0
      %p56 = por %p54, %p55
      %p57 = scmp.ne.s32.totalorder %s43, %s44
      %p58 = scmp.eq.s32.totalorder %s22, 1
      %p59 = por %p57, %p58
      %p61 = scmp.ne.s32.totalorder %s44, %s60
      %p62 = scmp.eq.s32.totalorder %s22, 0
      %p63 = por %p61, %p62
      %s65 = sadd.s32 %s64, 1
      %p68 = scmp.eq.s32.totalorder %s16, 1
      %p69 = scmp.ne.s32.totalorder %s64, %s66
      %p70 = scmp.eq.s32.totalorder %s16, 0
      %p71 = por %p69, %p70
      %p72 = scmp.ne.s32.totalorder %s64, %s66
      %p73 = scmp.eq.s32.totalorder %s21, 1
      %p74 = por %p72, %p73
      %p75 = scmp.ne.s32.totalorder %s66, %s67
      %p76 = scmp.eq.s32.totalorder %s21, 0
      %p77 = por %p75, %p76
      %p78 = scmp.ne.s32.totalorder %s66, %s67
      %p79 = scmp.eq.s32.totalorder %s22, 1
      %p80 = por %p78, %p79
      %p82 = scmp.ne.s32.totalorder %s67, %s81
      %p83 = scmp.eq.s32.totalorder %s22, 0
      %p84 = por %p82, %p83
      %s86 = sadd.s32 %s85, 1
      %p89 = scmp.eq.s32.totalorder %s16, 1
      %p90 = scmp.ne.s32.totalorder %s85, %s87
      %p91 = scmp.eq.s32.totalorder %s16, 0
      %p92 = por %p90, %p91
      %p93 = scmp.ne.s32.totalorder %s85, %s87
      %p94 = scmp.eq.s32.totalorder %s21, 1
      %p95 = por %p93, %p94
      %p96 = scmp.ne.s32.totalorder %s87, %s88
      %p97 = scmp.eq.s32.totalorder %s21, 0
      %p98 = por %p96, %p97
      %p99 = scmp.ne.s32.totalorder %s87, %s88
      %p100 = scmp.eq.s32.totalorder %s22, 1
      %p101 = por %p99, %p100
      %p103 = scmp.ne.s32.totalorder %s88, %s102
      %p104 = scmp.eq.s32.totalorder %s22, 0
      %p105 = por %p103, %p104
      %s106 = ssub.s32 %s23, %s35
      %p107 = scmp.eq.s32.totalorder %s106, 0
      %s109 = sadd.s32 %s108, 1
      %s110 = scalar_select %p107, %s108, %s109
      %p113 = pneg %p107
      %p114 = scmp.eq.s32.totalorder %s16, 1
      %p115 = por %p113, %p114
      %p116 = scmp.ne.s32.totalorder %s108, %s111
      %p117 = scmp.eq.s32.totalorder %s16, 0
      %p118 = por %p116, %p117
      %p119 = scmp.ne.s32.totalorder %s108, %s111
      %p120 = scmp.eq.s32.totalorder %s21, 1
      %p121 = por %p119, %p120
      %p122 = scmp.ne.s32.totalorder %s111, %s112
      %p123 = scmp.eq.s32.totalorder %s21, 0
      %p124 = por %p122, %p123
      %p125 = scmp.ne.s32.totalorder %s111, %s112
      %p126 = scmp.eq.s32.totalorder %s22, 1
      %p127 = por %p125, %p126
      %p129 = scmp.ne.s32.totalorder %s112, %s128
      %p130 = scmp.eq.s32.totalorder %s22, 0
      %p131 = por %p129, %p130
      %p132 = scmp.le.s32.totalorder 1, %s16
      %p133 = scmp.lt.s32.totalorder %s16, 3
      %p134 = pnand %p132, %p133
      %p135 = pneg %p134
      // Predicated region
      $region9: #{tpu_custom_call.1} parent=5 // pred_check
        _
      $region10: #{tpu_custom_call.1} parent=5 // pred_check_branch
        %137 = sbr.rel (%p134) target = $region12
      $region11: #{tpu_custom_call.1} parent=5 // pred_region
        %s138 = ssub.s32 %s16, 1
        // Predicated region
        $region13: #{tpu_custom_call.1} parent=11 // pred_check
          %p139 = pneg %p77
        $region14: #{tpu_custom_call.1} parent=11 // pred_check_branch
          %141 = sbr.rel (%p139) target = $region16
        $region15: #{tpu_custom_call.1} parent=11 // pred_region
          %143 = vsyncadd [#allocation7], 0
          %s145 = sshll.u32 %s1, 4
          %s146 = int_to_ptr.hbm [resolvable:$true] %s145
          %s147 = sshll.u32 [#allocation6], 4
          %s148 = int_to_ptr.vmem [resolvable:$true] %s147
          %150 = dma.hbm_to_vmem [thread:$0]  %s146, 64, %s148, [#allocation7]
        $region16: #{tpu_custom_call.1} parent=11 // pred_fallthru
          _
        // Predicated region
        $region17: #{tpu_custom_call.1} parent=11 // pred_check
          %p151 = pneg %p98
        $region18: #{tpu_custom_call.1} parent=11 // pred_check_branch
          %153 = sbr.rel (%p151) target = $region20
        $region19: #{tpu_custom_call.1} parent=11 // pred_region
          _
        $region20: #{tpu_custom_call.1} parent=11 // pred_fallthru
          _
      $region12: #{tpu_custom_call.1} parent=5 // pred_fallthru
        _
      %p154 = scmp.lt.s32.totalorder %s16, 2
      // Predicated region
      $region21: #{tpu_custom_call.1} parent=5 // pred_check
        %p155 = pneg %p154
      $region22: #{tpu_custom_call.1} parent=5 // pred_check_branch
        %157 = sbr.rel (%p155) target = $region24
      $region23: #{tpu_custom_call.1} parent=5 // pred_region
        // Predicated region
        $region25: #{tpu_custom_call.1} parent=23 // pred_check
          %p158 = pneg %p50
        $region26: #{tpu_custom_call.1} parent=23 // pred_check_branch
          %160 = sbr.rel (%p158) target = $region28
        $region27: #{tpu_custom_call.1} parent=23 // pred_region
          %s161 = sand.u32 %s40, 1
          %s162 = scalar_lea.sflag [#allocation4], %s161
          %s163 = sand.u32 %s40, 1
          %s164 = smul.addr %s163, 8
          %s165 = scalar_lea.vmem [#allocation3], %s164
          %s166 = smul.u32 2, %s24
          %168 = vsyncadd %s162, 0
          %s169 = smul.addr %s23, 2
          %s170 = sadd.s32 %s166, %s169
          %s171 = smul.addr %s170, 4
          %s172 = scalar_lea.hbm %s0, %s171
          %s174 = sshll.u32 %s172, 4
          %s175 = int_to_ptr.hbm [resolvable:$true] %s174
          %s176 = sshll.u32 %s165, 4
          %s177 = int_to_ptr.vmem [resolvable:$true] %s176
          %179 = dma.hbm_to_vmem [thread:$0]  %s175, 128, %s177, %s162
        $region28: #{tpu_custom_call.1} parent=23 // pred_fallthru
          _
      $region24: #{tpu_custom_call.1} parent=5 // pred_fallthru
        _
      %p180 = scmp.le.s32.totalorder 1, %s16
      %p181 = scmp.lt.s32.totalorder %s16, 3
      %p182 = pnand %p180, %p181
      %p183 = pneg %p182
      // Predicated region
      $region29: #{tpu_custom_call.1} parent=5 // pred_check
        _
      $region30: #{tpu_custom_call.1} parent=5 // pred_check_branch
        %185 = sbr.rel (%p182) target = $region32
      $region31: #{tpu_custom_call.1} parent=5 // pred_region
        %s186 = ssub.s32 %s16, 1
        %s187 = sand.u32 %s43, 1
        %s188 = scalar_lea.sflag [#allocation4], %s187
        %s189 = sand.u32 %s43, 1
        %s190 = smul.addr %s189, 8
        %s191 = scalar_lea.vmem [#allocation3], %s190
        // Predicated region
        $region33: #{tpu_custom_call.1} parent=31 // pred_check
          %p192 = pneg %p56
        $region34: #{tpu_custom_call.1} parent=31 // pred_check_branch
          %194 = sbr.rel (%p192) target = $region36
        $region35: #{tpu_custom_call.1} parent=31 // pred_region
          %196 = dma.done %s188, 128
        $region36: #{tpu_custom_call.1} parent=31 // pred_fallthru
          _
        // Predicated region
        $region37: #{tpu_custom_call.1} parent=31 // pred_check
          %p197 = pneg %p77
        $region38: #{tpu_custom_call.1} parent=31 // pred_check_branch
          %199 = sbr.rel (%p197) target = $region40
        $region39: #{tpu_custom_call.1} parent=31 // pred_region
          %201 = dma.done [#allocation7], 64
        $region40: #{tpu_custom_call.1} parent=31 // pred_fallthru
          _
        %s202 = sand.u32 %s43, 1
        %s203 = scalar_lea.sflag [#allocation4], %s202
        %s204 = sand.u32 %s43, 1
        %s205 = smul.addr %s204, 8
        %s206 = scalar_lea.vmem [#allocation3], %s205
        %p207 = pneg %p56
        %p208 = pneg %p53
        %p209 = pneg %p77
        %p210 = pneg %p74
        %p211 = pneg %p98
        %p212 = pneg %p95
        %p213 = pneg %p124
        %p214 = pneg %p121
        %s215 = sand.u32 %s111, 1
        %s216 = scalar_lea.sflag [#allocation5], %s215
        %s217 = sand.u32 %s111, 1
        %s218 = scalar_lea.vmem [#allocation8], %s217
        %s219 = smul.u32 2, %s26
        %p220 = scmp.eq.s32.totalorder %s26, 0
        // Predicated region
        $region41: #{tpu_custom_call.1} parent=31 // pred_check
          %p221 = pneg %p220
        $region42: #{tpu_custom_call.1} parent=31 // pred_check_branch
          %223 = sbr.rel (%p221) target = $region44
        $region43: #{tpu_custom_call.1} parent=31 // pred_region
          %vm224 = vcmask 3072
          %225 = vst.msk [vmem:[#allocation2] sm:$0xf] %vm224, 0.0
        $region44: #{tpu_custom_call.1} parent=31 // pred_fallthru
          _
        %v226 = vld [vmem:[%s191] sm:$0xff]
        %v227 = vld [vmem:[#allocation2] sm:$0xf]
        %229 = vst [vmem:[#allocation1] ss:$2 sm:$0xff] %v226
        %v230 = vld.sshfl [vmem:[#allocation1] sm:$0xff pattern:$0x75316420]
        %v231 = vld.sshfl [vmem:[#allocation1 + $0x8] sm:$0xff pattern:$0x75316420]
        %vm234 = vcmask 1043456
        %v235 = vsel %vm234, %v230, 0.0
        %v236 = vsel %vm234, %v231, 0.0
        %v237 = vadd.f32 %v235, %v236
        %238 = vadd.xlane.f32.xlu0 %v237
        %v239 = vpop.xlane.xlu0 %238
        %v240 = vadd.f32 %v227, %v239
        %vm241 = vcmask 3072
        %242 = vst.msk [vmem:[#allocation2] sm:$0xf] %vm241, %v240
        // Predicated region
        $region45: #{tpu_custom_call.1} parent=31 // pred_check
          %p243 = pneg %p220
        $region46: #{tpu_custom_call.1} parent=31 // pred_check_branch
          %245 = sbr.rel (%p243) target = $region48
        $region47: #{tpu_custom_call.1} parent=31 // pred_region
          %v246 = vld [vmem:[#allocation2] sm:$0xf]
          %v247 = vmul.f32 %v246, 0.00390625
          %v248 = vld [vmem:[#allocation6] sm:$0xf]
          %v249 = vld [vmem:[%s2] sm:$0x1]
          %251 = vset.pattern.permute.xlu0 0
          %252 = vperm.xlu0 %251, %v247
          %v253 = vpop.permute.xlu0 %252
          %v254 = vlaneseq
          %v255 = vand.u32 %v254, 127
          %v256 = vperm.slane %v253, %v255
          %vm257 = vcmask 31744
          %v258 = vsel %vm257, %v256, 0
          %v261 = vsel %vm234, %v248, 0
          %263 = vmatpush.msra.mxu0 0.0
          %264 = vmatpush.msra.mxu0 0.0
          %265 = vmatpush.msra.mxu0 0.0
          %266 = vmatpush.msra.mxu0 0.0
          %267 = vmatpush.msra.mxu0 0.0
          %268 = vmatpush.msra.mxu0 0.0
          %269 = vmatpush.msra.mxu0 0.0
          %270 = vmatpush.msra.mxu0 0.0
          %271 = vmatpush.msra.mxu0 0.0
          %272 = vmatpush.msra.mxu0 0.0
          %273 = vmatpush.msra.mxu0 0.0
          %274 = vmatpush.msra.mxu0 0.0
          %275 = vmatpush.msra.mxu0 0.0
          %276 = vmatpush.msra.mxu0 0.0
          %277 = vmatpush.msra.mxu0 0.0
          %278 = vmatpush.msra.mxu0 %v261
          %279 = vmatmul.f32.gmra.mxu0 %v258
          %v280 = vpop.f32.mrf.mxu0
          %v281 = vadd.f32 %v249, %v280
          %282 = vdwg.mxu0
          %vm283 = vcmask 57344
          %284 = vst.msk [vmem:[%s218] sm:$0x1] %vm283, %v281
        $region48: #{tpu_custom_call.1} parent=31 // pred_fallthru
          _
        %s285 = sand.u32 %s111, 1
        %s286 = scalar_lea.sflag [#allocation5], %s285
        %s287 = sand.u32 %s111, 1
        %s288 = scalar_lea.vmem [#allocation8], %s287
        // Predicated region
        $region49: #{tpu_custom_call.1} parent=31 // pred_check
          %p289 = pneg %p121
        $region50: #{tpu_custom_call.1} parent=31 // pred_check_branch
          %291 = sbr.rel (%p289) target = $region52
        $region51: #{tpu_custom_call.1} parent=31 // pred_region
          %293 = vsyncadd %s286, 0
          %s294 = scalar_lea.hbm %s3, %s25
          %s296 = sshll.u32 %s288, 4
          %s297 = int_to_ptr.vmem [resolvable:$true] %s296
          %s298 = sshll.u32 %s294, 4
          %s299 = int_to_ptr.hbm [resolvable:$true] %s298
          %301 = dma.vmem_to_hbm [thread:$0]  %s297, 16, %s299, %s286
        $region52: #{tpu_custom_call.1} parent=31 // pred_fallthru
          _
      $region32: #{tpu_custom_call.1} parent=5 // pred_fallthru
        _
      %p302 = scmp.le.s32.totalorder 2, %s16
      // Predicated region
      $region53: #{tpu_custom_call.1} parent=5 // pred_check
        %p303 = pneg %p302
      $region54: #{tpu_custom_call.1} parent=5 // pred_check_branch
        %305 = sbr.rel (%p303) target = $region56
      $region55: #{tpu_custom_call.1} parent=5 // pred_region
        %s306 = ssub.s32 %s16, 2
        // Predicated region
        $region57: #{tpu_custom_call.1} parent=55 // pred_check
          %p307 = pneg %p127
        $region58: #{tpu_custom_call.1} parent=55 // pred_check_branch
          %309 = sbr.rel (%p307) target = $region60
        $region59: #{tpu_custom_call.1} parent=55 // pred_region
          %s310 = sand.u32 %s112, 1
          %s311 = scalar_lea.sflag [#allocation5], %s310
          %s312 = sand.u32 %s112, 1
          %s313 = scalar_lea.vmem [#allocation8], %s312
          %315 = dma.done %s311, 16
        $region60: #{tpu_custom_call.1} parent=55 // pred_fallthru
          _
      $region56: #{tpu_custom_call.1} parent=5 // pred_fallthru
        _
    $region6: #{tpu_custom_call.1} parent=1 // loop_footer
      %s20 = sadd.s32 1, %s16
    $region7: #{tpu_custom_call.1} parent=1 // loop_footer_branch
      %15 = sbr.rel target = $region3
    $region8: #{tpu_custom_call.1} parent=1 // loop_exit
      _
    %316 = vsyncpa [#allocation4], 1
    %s317 = scalar_lea.sflag [#allocation4], 1
    %318 = vsyncpa %s317, 1
    %319 = vsyncpa [#allocation7], 1
    %320 = vsyncpa [#allocation5], 1
    %s321 = scalar_lea.sflag [#allocation5], 1
    %322 = vsyncpa %s321, 1

</llo_original>
